<compile_context>
chip_gen: v5e
topology: v5e:2x2
jax: 0.10.0
libtpu: 0.0.40
codegen_flags: <defaults>
</compile_context>

<pallas_src>
import functools

import jax
import jax.numpy as jnp
import numpy as np
from jax.experimental import pallas as pl
from jax.experimental.pallas import tpu as pltpu


def _ffn_kernel(x_ref, w1_ref, b1_ref, w2_ref, b2_ref, o_ref):
    """One token-slab per grid step: y = relu(x @ W1 + b1) @ W2 + b2."""
    x = x_ref[...]                                                   # (Tm, dm)
    h = jnp.dot(x, w1_ref[...],
                preferred_element_type=jnp.float32) + b1_ref[...]    # (Tm, 4dm)
    h = jnp.maximum(h, 0.0)                                          # ReLU (VPU)
    y = jnp.dot(h, w2_ref[...],
                preferred_element_type=jnp.float32) + b2_ref[...]    # (Tm, dm)
    # TODO(synk): nn.Dropout(0.2) is an eval-mode identity; not applied here.
    o_ref[...] = y.astype(o_ref.dtype)


def _round_up(n, m):
    return ((n + m - 1) // m) * m


@functools.partial(jax.jit, static_argnames=("block_tokens",))
def feed_forward(x, w1, b1, w2, b2, *, block_tokens=512):
    """x: (B, T, dm). w1: (dm, 4dm), b1: (1, 4dm), w2: (4dm, dm), b2: (1, dm).

    Weights are already pre-transposed to (in_features, out_features) so the
    kernel computes y = x @ W (same math as PyTorch's x @ W^T).
    """
    B, T, dm = x.shape
    dh = w1.shape[1]
    N = B * T

    # Flatten tokens and pick an 8-aligned token tile; pad N up if needed.
    xf = x.reshape(N, dm)
    tm = min(block_tokens, _round_up(N, 8))
    n_pad = _round_up(N, tm)
    if n_pad != N:
        xf = jnp.pad(xf, ((0, n_pad - N), (0, 0)))

    grid = (n_pad // tm,)

    out = pl.pallas_call(
        _ffn_kernel,
        out_shape=jax.ShapeDtypeStruct((n_pad, dm), x.dtype),
        grid_spec=pltpu.PrefetchScalarGridSpec(
            num_scalar_prefetch=0,
            grid=grid,
            in_specs=[
                pl.BlockSpec((tm, dm), lambda i: (i, 0)),   # x tokens
                pl.BlockSpec((dm, dh), lambda i: (0, 0)),   # W1 (resident)
                pl.BlockSpec((1, dh), lambda i: (0, 0)),    # b1
                pl.BlockSpec((dh, dm), lambda i: (0, 0)),   # W2 (resident)
                pl.BlockSpec((1, dm), lambda i: (0, 0)),    # b2
            ],
            out_specs=pl.BlockSpec((tm, dm), lambda i: (i, 0)),
        ),
        compiler_params=pltpu.CompilerParams(
            # Token-tile axis is embarrassingly parallel -> megacore-shardable.
            dimension_semantics=("parallel",)),
    )(xf, w1, b1, w2, b2)

    return out[:N].reshape(B, T, dm)


def _init_linear(key, fan_in, fan_out):
    """PyTorch nn.Linear default init: U(-1/sqrt(fan_in), 1/sqrt(fan_in)).

    Returned weight is already transposed to (fan_in, fan_out)."""
    kw, kb = jax.random.split(key)
    bound = 1.0 / np.sqrt(fan_in)
    w = jax.random.uniform(kw, (fan_in, fan_out), jnp.float32, -bound, bound)
    b = jax.random.uniform(kb, (1, fan_out), jnp.float32, -bound, bound)
    return w, b


def _reference(x, w1, b1, w2, b2):
    hi = jax.lax.Precision.HIGHEST
    h = jnp.maximum(jnp.dot(x, w1, precision=hi) + b1, 0.0)
    return jnp.dot(h, w2, precision=hi) + b2


if __name__ == "__main__":
    # Small shapes consistent with the module's forward: x is (B, T, dm),
    # hidden = 4 * dm.
    B, T, dm = 2, 8, 32
    dh = 4 * dm  # 128 -> lane-dense hidden activations

    root = jax.random.PRNGKey(0)
    kx, k1, k2 = jax.random.split(root, 3)

    x = jax.random.normal(kx, (B, T, dm), jnp.float32)
    w1, b1 = _init_linear(k1, dm, dh)   # Linear(dm, 4*dm)
    w2, b2 = _init_linear(k2, dh, dm)   # Linear(4*dm, dm)

    out = feed_forward(x, w1, b1, w2, b2)
    out = jax.block_until_ready(out)

    ref = _reference(x, w1, b1, w2, b2)
    np.testing.assert_allclose(np.asarray(out), np.asarray(ref),
                               rtol=1e-4, atol=1e-4)
    print("KERNEL_OK")
</pallas_src>

<mosaic_0001>
module attributes {stable_mosaic.version = 11 : i64} {
  func.func @_ffn_kernel(%arg0: i32, %arg1: memref<16x32xf32, #tpu.memory_space<vmem>>, %arg2: memref<32x128xf32, #tpu.memory_space<vmem>>, %arg3: memref<1x128xf32, #tpu.memory_space<vmem>>, %arg4: memref<128x32xf32, #tpu.memory_space<vmem>>, %arg5: memref<1x32xf32, #tpu.memory_space<vmem>>, %arg6: memref<16x32xf32, #tpu.memory_space<vmem>>) attributes {dimension_semantics = [#tpu.dimension_semantics<parallel>], iteration_bounds = array<i64: 1>, scalar_prefetch = 0 : i64, scratch_operands = 0 : i64, tpu.core_type = #tpu.core_type<tc>, window_params = [{transform_indices = @transform_0, window_bounds = array<i64: 16, 32>}, {pipeline_mode = #tpu.pipeline_mode<synchronous>, transform_indices = @transform_1, window_bounds = array<i64: 32, 128>}, {pipeline_mode = #tpu.pipeline_mode<synchronous>, transform_indices = @transform_2, window_bounds = array<i64: 1, 128>}, {pipeline_mode = #tpu.pipeline_mode<synchronous>, transform_indices = @transform_3, window_bounds = array<i64: 128, 32>}, {pipeline_mode = #tpu.pipeline_mode<synchronous>, transform_indices = @transform_4, window_bounds = array<i64: 1, 32>}, {transform_indices = @transform_5, window_bounds = array<i64: 16, 32>}]} {
    %c0 = arith.constant 0 : index
    %c0_0 = arith.constant 0 : index
    %0 = vector.load %arg1[%c0, %c0_0] : memref<16x32xf32, #tpu.memory_space<vmem>>, vector<16x32xf32>
    %c0_1 = arith.constant 0 : index
    %c0_2 = arith.constant 0 : index
    %1 = vector.load %arg2[%c0_1, %c0_2] : memref<32x128xf32, #tpu.memory_space<vmem>>, vector<32x128xf32>
    %cst = arith.constant dense<0.000000e+00> : vector<16x128xf32>
    %2 = tpu.matmul %0, %1, %cst {dimension_numbers = #tpu.dot_dimension_numbers<[1], [0], [0], [1], [0, 0, 1, 1], [], []>} : vector<16x32xf32>, vector<32x128xf32>, vector<16x128xf32> -> vector<16x128xf32>
    %c0_3 = arith.constant 0 : index
    %c0_4 = arith.constant 0 : index
    %3 = vector.load %arg3[%c0_3, %c0_4] : memref<1x128xf32, #tpu.memory_space<vmem>>, vector<1x128xf32>
    %4 = vector.broadcast %3 : vector<1x128xf32> to vector<16x128xf32>
    %5 = arith.addf %2, %4 : vector<16x128xf32>
    %cst_5 = arith.constant 0.000000e+00 : f32
    %6 = vector.broadcast %cst_5 : f32 to vector<16x128xf32>
    %7 = arith.maximumf %5, %6 : vector<16x128xf32>
    %c0_6 = arith.constant 0 : index
    %c0_7 = arith.constant 0 : index
    %8 = vector.load %arg4[%c0_6, %c0_7] : memref<128x32xf32, #tpu.memory_space<vmem>>, vector<128x32xf32>
    %cst_8 = arith.constant dense<0.000000e+00> : vector<16x32xf32>
    %9 = tpu.matmul %7, %8, %cst_8 {dimension_numbers = #tpu.dot_dimension_numbers<[1], [0], [0], [1], [0, 0, 1, 1], [], []>} : vector<16x128xf32>, vector<128x32xf32>, vector<16x32xf32> -> vector<16x32xf32>
    %c0_9 = arith.constant 0 : index
    %c0_10 = arith.constant 0 : index
    %10 = vector.load %arg5[%c0_9, %c0_10] : memref<1x32xf32, #tpu.memory_space<vmem>>, vector<1x32xf32>
    %11 = vector.broadcast %10 : vector<1x32xf32> to vector<16x32xf32>
    %12 = arith.addf %9, %11 : vector<16x32xf32>
    %c0_11 = arith.constant 0 : index
    %c0_12 = arith.constant 0 : index
    %13 = vector.load %arg6[%c0_11, %c0_12] : memref<16x32xf32, #tpu.memory_space<vmem>>, vector<16x32xf32>
    tpu.vector_store %arg6[%c0_11, %c0_12], %12 {strides = array<i32>} : memref<16x32xf32, #tpu.memory_space<vmem>>, vector<16x32xf32>,
    return
  }
  func.func @transform_0(%arg0: i32) -> (i32, i32) {
    %c0_i32 = arith.constant 0 : i32
    %c0_i32_0 = arith.constant 0 : i32
    return %arg0, %c0_i32 : i32, i32
  }
  func.func @transform_1(%arg0: i32) -> (i32, i32) {
    %c0_i32 = arith.constant 0 : i32
    %c0_i32_0 = arith.constant 0 : i32
    %c0_i32_1 = arith.constant 0 : i32
    return %c0_i32, %c0_i32_0 : i32, i32
  }
  func.func @transform_2(%arg0: i32) -> (i32, i32) {
    %c0_i32 = arith.constant 0 : i32
    %c0_i32_0 = arith.constant 0 : i32
    %c0_i32_1 = arith.constant 0 : i32
    return %c0_i32, %c0_i32_0 : i32, i32
  }
  func.func @transform_3(%arg0: i32) -> (i32, i32) {
    %c0_i32 = arith.constant 0 : i32
    %c0_i32_0 = arith.constant 0 : i32
    %c0_i32_1 = arith.constant 0 : i32
    return %c0_i32, %c0_i32_0 : i32, i32
  }
  func.func @transform_4(%arg0: i32) -> (i32, i32) {
    %c0_i32 = arith.constant 0 : i32
    %c0_i32_0 = arith.constant 0 : i32
    %c0_i32_1 = arith.constant 0 : i32
    return %c0_i32, %c0_i32_0 : i32, i32
  }
  func.func @transform_5(%arg0: i32) -> (i32, i32) {
    %c0_i32 = arith.constant 0 : i32
    %c0_i32_0 = arith.constant 0 : i32
    return %arg0, %c0_i32 : i32, i32
  }
}

</mosaic_0001>

<llo_original>
// kernel: feed_forward.1
$region0: #{feed_forward.1}
  #allocation0 [shape = 'u32[]', space=smem, size = 0x4, offset = 0x4, fixed_abs, tag = 'smem constant byte address 0x4 - core index']
  #allocation1 [shape = 'u32[72,128]{1,0:T(1,128)}', space=vmem, size = 0x9000, scoped, tag = 'internal scratch']
  %s0 = inlined_call_operand.vmem [shape: f32[16,32], index: 0, kind: input, shape index: {}]
  %s1 = inlined_call_operand.vmem [shape: f32[32,128], index: 1, kind: input, shape index: {}]
  %s2 = inlined_call_operand.vmem [shape: f32[1,128], index: 2, kind: input, shape index: {}]
  %s3 = inlined_call_operand.vmem [shape: f32[128,32], index: 3, kind: input, shape index: {}]
  %s4 = inlined_call_operand.vmem [shape: f32[1,32], index: 4, kind: input, shape index: {}]
  %s5 = inlined_call_operand.hbm [shape: f32[16,32], index: 5, kind: output, shape index: {}]
  %s6 = sld [smem:[#allocation0]]
  $region30: #{feed_forward.1} parent=0
    _
  %s8 = ssub.s32 1, %s6
  %s9 = scalar_select 0, %s8, %s6
  $region1: #{feed_forward.1} parent=0
    #allocation2 [shape = 'u8[8192]{0}', space=vmem, size = 0x2000, scoped, tag = 'output window, operand 0, single buffered']
    #allocation3 [shape = 's32[1]{0}', space=sflag, size = 0x4, scoped, tag = 'scoped memory for feed_forward.1']
    %10 = vsyncpa [#allocation3], 0
    // Predicated region
    $region2: #{feed_forward.1} parent=1 // pred_check
      _
    $region3: #{feed_forward.1} parent=1 // pred_check_branch
      %12 = sbr.rel (0) target = $region5
    $region4: #{feed_forward.1} parent=1 // pred_region
      _
    $region5: #{feed_forward.1} parent=1 // pred_fallthru
      _
    // Predicated region
    $region6: #{feed_forward.1} parent=1 // pred_check
      _
    $region7: #{feed_forward.1} parent=1 // pred_check_branch
      %14 = sbr.rel (0) target = $region9
    $region8: #{feed_forward.1} parent=1 // pred_region
      _
    $region9: #{feed_forward.1} parent=1 // pred_fallthru
      _
    // Predicated region
    $region10: #{feed_forward.1} parent=1 // pred_check
      _
    $region11: #{feed_forward.1} parent=1 // pred_check_branch
      %16 = sbr.rel (0) target = $region13
    $region12: #{feed_forward.1} parent=1 // pred_region
      _
    $region13: #{feed_forward.1} parent=1 // pred_fallthru
      _
    // Predicated region
    $region14: #{feed_forward.1} parent=1 // pred_check
      _
    $region15: #{feed_forward.1} parent=1 // pred_check_branch
      %18 = sbr.rel (0) target = $region17
    $region16: #{feed_forward.1} parent=1 // pred_region
      _
    $region17: #{feed_forward.1} parent=1 // pred_fallthru
      _
    // Predicated region
    $region18: #{feed_forward.1} parent=1 // pred_check
      _
    $region19: #{feed_forward.1} parent=1 // pred_check_branch
      %20 = sbr.rel (0) target = $region21
    $region20: #{feed_forward.1} parent=1 // pred_region
      _
    $region21: #{feed_forward.1} parent=1 // pred_fallthru
      _
    %v21 = vld [vmem:[%s0] sm:$0xff]
    %v22 = vld [vmem:[%s0 + $0x8] sm:$0xff]
    %v23 = vld [vmem:[%s1] sm:$0xff]
    %v24 = vld [vmem:[%s1 + $0x8] sm:$0xff]
    %v25 = vld [vmem:[%s1 + $0x10] sm:$0xff]
    %v26 = vld [vmem:[%s1 + $0x18] sm:$0xff]
    %v27 = vld [vmem:[%s2] sm:$0x1]
    %v29 = vperm.slane %v27, 0
    %vm31 = vcmask 261120
    %v33 = vsel %vm31, %v21, 0
    %v36 = vsel %vm31, %v22, 0
    %38 = vmatpush.msra.mxu0 0.0
    %39 = vmatpush.msra.mxu0 0.0
    %40 = vmatpush.msra.mxu0 0.0
    %41 = vmatpush.msra.mxu0 0.0
    %42 = vmatpush.msra.mxu0 0.0
    %43 = vmatpush.msra.mxu0 0.0
    %44 = vmatpush.msra.mxu0 0.0
    %45 = vmatpush.msra.mxu0 0.0
    %46 = vmatpush.msra.mxu0 0.0
    %47 = vmatpush.msra.mxu0 0.0
    %48 = vmatpush.msra.mxu0 0.0
    %49 = vmatpush.msra.mxu0 0.0
    %50 = vmatpush.msra.mxu0 %v26
    %51 = vmatpush.msra.mxu0 %v25
    %52 = vmatpush.msra.mxu0 %v24
    %53 = vmatpush.msra.mxu0 %v23
    %54 = vmatmul.f32.gmra.mxu0 %v33
    %v55 = vpop.f32.mrf.mxu0
    %v56 = vadd.f32 %v29, %v55
    %57 = vmatmul.f32.gmra.mxu0 %v36
    %v58 = vpop.f32.mrf.mxu0
    %v59 = vadd.f32 %v29, %v58
    %60 = vdwg.mxu0
    %v61 = vmax.f32 %v56, 0.0
    %v62 = vmax.f32 %v59, 0.0
    %v63 = vld [vmem:[%s3] sm:$0xff]
    %v64 = vld [vmem:[%s3 + $0x8] sm:$0xff]
    %v65 = vld [vmem:[%s3 + $0x10] sm:$0xff]
    %v66 = vld [vmem:[%s3 + $0x18] sm:$0xff]
    %v67 = vld [vmem:[%s3 + $0x20] sm:$0xff]
    %v68 = vld [vmem:[%s3 + $0x28] sm:$0xff]
    %v69 = vld [vmem:[%s3 + $0x30] sm:$0xff]
    %v70 = vld [vmem:[%s3 + $0x38] sm:$0xff]
    %v71 = vld [vmem:[%s3 + $0x40] sm:$0xff]
    %v72 = vld [vmem:[%s3 + $0x48] sm:$0xff]
    %v73 = vld [vmem:[%s3 + $0x50] sm:$0xff]
    %v74 = vld [vmem:[%s3 + $0x58] sm:$0xff]
    %v75 = vld [vmem:[%s3 + $0x60] sm:$0xff]
    %v76 = vld [vmem:[%s3 + $0x68] sm:$0xff]
    %v77 = vld [vmem:[%s3 + $0x70] sm:$0xff]
    %v78 = vld [vmem:[%s3 + $0x78] sm:$0xff]
    %v79 = vld [vmem:[%s4] sm:$0x1]
    %v81 = vperm.slane %v79, 0
    %83 = vmatpush.msra.mxu0 %v78
    %84 = vmatpush.msra.mxu0 %v77
    %85 = vmatpush.msra.mxu0 %v76
    %86 = vmatpush.msra.mxu0 %v75
    %87 = vmatpush.msra.mxu0 %v74
    %88 = vmatpush.msra.mxu0 %v73
    %89 = vmatpush.msra.mxu0 %v72
    %90 = vmatpush.msra.mxu0 %v71
    %91 = vmatpush.msra.mxu0 %v70
    %92 = vmatpush.msra.mxu0 %v69
    %93 = vmatpush.msra.mxu0 %v68
    %94 = vmatpush.msra.mxu0 %v67
    %95 = vmatpush.msra.mxu0 %v66
    %96 = vmatpush.msra.mxu0 %v65
    %97 = vmatpush.msra.mxu0 %v64
    %98 = vmatpush.msra.mxu0 %v63
    %99 = vmatmul.f32.gmra.mxu0 %v61
    %v100 = vpop.f32.mrf.mxu0
    %v101 = vadd.f32 %v81, %v100
    %102 = vmatmul.f32.gmra.mxu0 %v62
    %v103 = vpop.f32.mrf.mxu0
    %v104 = vadd.f32 %v81, %v103
    %105 = vdwg.mxu0
    %106 = vst.msk [vmem:[#allocation2] sm:$0xff] %vm31, %v101
    %107 = vst.msk [vmem:[#allocation2 + $0x8] sm:$0xff] %vm31, %v104
    // Predicated region
    $region22: #{feed_forward.1} parent=1 // pred_check
      _
    $region23: #{feed_forward.1} parent=1 // pred_check_branch
      %109 = sbr.rel (0) target = $region25
    $region24: #{feed_forward.1} parent=1 // pred_region
      %111 = vsyncadd [#allocation3], 0
      %s112 = sshll.u32 [#allocation2], 4
      %s113 = int_to_ptr.vmem [resolvable:$true] %s112
      %s114 = sshll.u32 %s5, 4
      %s115 = int_to_ptr.hbm [resolvable:$true] %s114
      %120 = dma.vmem_to_hbm [thread:$0]  %s113, 256, %s115, [#allocation3], 128, 128, 8
    $region25: #{feed_forward.1} parent=1 // pred_fallthru
      _
    // Predicated region
    $region26: #{feed_forward.1} parent=1 // pred_check
      _
    $region27: #{feed_forward.1} parent=1 // pred_check_branch
      %122 = sbr.rel (0) target = $region29
    $region28: #{feed_forward.1} parent=1 // pred_region
      %124 = dma.done [#allocation3], 256
    $region29: #{feed_forward.1} parent=1 // pred_fallthru
      _
    %125 = vsyncpa [#allocation3], 1

</llo_original>
